<compile_context>
chip_gen: v6e
topology: v6e:2x2x1
jax: 0.10.0
libtpu: 0.0.40
codegen_flags: <defaults>
</compile_context>

<pallas_src>
import jax
import jax.numpy as jnp
from jax.experimental import pallas as pl
from jax.experimental.pallas import tpu as pltpu


def _build_pe(max_len: int, d_model: int) -> jnp.ndarray:
    """Deterministic sinusoidal table, identical math to the PyTorch __init__."""
    position = jnp.arange(0, max_len, dtype=jnp.float32)[:, None]            # (max_len, 1)
    div_term = jnp.exp(jnp.arange(0, d_model, 2, dtype=jnp.float32)
                       * (-jnp.log(10000.0) / d_model))                      # (d_model//2,)
    pe = jnp.zeros((max_len, 1, d_model), dtype=jnp.float32)
    pe = pe.at[:, 0, 0::2].set(jnp.sin(position * div_term))
    pe = pe.at[:, 0, 1::2].set(jnp.cos(position * div_term))
    return pe


def _pos_enc_kernel(x_ref, pe_ref, o_ref):
    # x_ref / o_ref: (tile_s, tile_b*D) VMEM tiles (lane/sublane dense)
    # pe_ref:        (tile_s, D)        VMEM tile
    D = pe_ref.shape[-1]
    nb = x_ref.shape[-1] // D
    for b in range(nb):                       # static unroll; 128-lane-aligned slabs
        lo = b * D
        # Re-index pe_ref inside the loop (do NOT hoist): keeps the live range
        # to ~D/128 vregs per slab instead of tile_s*D/1024 vregs across the
        # whole unroll; VMEM re-loads are cheap (3 vld slots / cycle).
        o_ref[:, lo:lo + D] = x_ref[:, lo:lo + D] + pe_ref[...]


def _sublane_granularity(dtype) -> int:
    """Minimum row-tile multiple: 8 for 4-byte, 16 for 2-byte, 32 for 1-byte dtypes."""
    return max(8, 32 // jnp.dtype(dtype).itemsize)


def _vmem_plan():
    """Generation-aware (budget for double-buffered working set, vmem_limit, min_steps)."""
    try:
        cap = int(getattr(pltpu.get_tpu_info(), "vmem_capacity_bytes"))
    except Exception:
        cap = 64 << 20                                    # conservative (v7x per-TC)
    if cap >= (128 << 20):                                # v5e / v6e: 128 MiB physical
        return 48 << 20, 96 << 20, 2                      # 1 TC -> prefer biggest tile
    if cap >= (64 << 20):                                 # v7x: 64 MiB per TC, 2 TCs
        return 40 << 20, 56 << 20, 4                      # >= 2 row blocks per TC
    return max(4 << 20, min(14 << 20, cap // 2)), None, 2


def _pick_tiles(S, B, D, itemsize, budget, sub, min_steps):
    """(tile_s, tile_b): largest blocks whose double-buffered x+out+pe set fits budget."""
    def ws_bytes(ts, tb):
        return 2 * ts * (2 * tb * D + D) * itemsize      # double-buffered x_in + out + pe

    # 1) widest batch-column group (divisor of B) that fits at the minimum row tile
    tile_b = None
    for tb in sorted((d for d in range(1, B + 1) if B % d == 0), reverse=True):
        if ws_bytes(sub, tb) <= budget:
            tile_b = tb
            break
    if tile_b is None:                                    # rows too wide even at tb=1
        return None, None

    # 2) largest row tile (multiple of sub, capped at padded S) within the budget
    row_bytes = 2 * (2 * tile_b * D + D) * itemsize
    max_ts = (budget // row_bytes) // sub * sub
    s_pad = pl.cdiv(S, sub) * sub
    tile_s = max(sub, min(max_ts, s_pad))

    # 3) prefer >= min_steps row blocks (DMA/compute overlap, v7x TC sharding)
    if pl.cdiv(S, tile_s) < min_steps:
        ts_alt = pl.cdiv(pl.cdiv(S, min_steps), sub) * sub
        tile_s = max(sub, min(tile_s, ts_alt))
    return tile_s, tile_b


def positional_encoding(x: jnp.ndarray, pe: jnp.ndarray, *,
                        tile_s: int | None = None,
                        tile_b: int | None = None,
                        min_pallas_elems: int = 1 << 15) -> jnp.ndarray:
    """x: (S, B, D); pe: (max_len, 1, D) or (max_len, D); returns x + pe[:S] (x.dtype)."""
    S, B, D = x.shape
    pe2 = pe.reshape(pe.shape[0], pe.shape[-1]) if pe.ndim == 3 else pe      # free reshape
    if pe2.shape[0] < S:
        raise ValueError(f"pe table too short: max_len={pe2.shape[0]} < seq_len={S}")
    pe2 = pe2.astype(x.dtype)                              # pre-cast: no in-kernel converts

    # Tiny inputs (per-step overhead dominates) or lane-misaligned D: fused XLA add.
    # TODO(synk): Pallas path with lane-tiled pe for D % 128 != 0.
    if x.size < min_pallas_elems or D % 128 != 0:
        return (x + pe2[:S][:, None, :]).astype(x.dtype)

    sub = _sublane_granularity(x.dtype)
    budget, vmem_limit, min_steps = _vmem_plan()
    ts, tb = _pick_tiles(S, B, D, jnp.dtype(x.dtype).itemsize, budget, sub, min_steps)
    if tile_s is not None:
        ts = tile_s
    if tile_b is not None:
        tb = tile_b
    if ts is None or tb is None:
        # Even the smallest block would blow scoped VMEM (pathologically wide rows).
        return (x + pe2[:S][:, None, :]).astype(x.dtype)
    assert ts % sub == 0 and B % tb == 0

    x2 = x.reshape(S, B * D)                               # row-major, free
    n_i = pl.cdiv(S, ts)                                   # ragged S: padded last block
    n_j = B // tb

    cp_kwargs = dict(dimension_semantics=("parallel", "parallel"))
    if vmem_limit is not None:
        cp_kwargs["vmem_limit_bytes"] = int(vmem_limit)

    out2 = pl.pallas_call(
        _pos_enc_kernel,
        out_shape=jax.ShapeDtypeStruct((S, B * D), x.dtype),
        grid_spec=pl.GridSpec(
            grid=(n_i, n_j),
            in_specs=[
                pl.BlockSpec((ts, tb * D), lambda i, j: (i, j)),
                pl.BlockSpec((ts, D), lambda i, j: (i, 0)),   # slices full pe table
            ],
            out_specs=pl.BlockSpec((ts, tb * D), lambda i, j: (i, j)),
        ),
        compiler_params=pltpu.CompilerParams(**cp_kwargs),
    )(x2, pe2)
    return out2.reshape(S, B, D)


if __name__ == "__main__":
    d_model = 128
    max_len = 5000                      # matches the PyTorch module default
    pe = _build_pe(max_len, d_model)

    # --- 1) Main Pallas path: f32, lane/sublane-dense tiles ----------------------
    S, B = 512, 2
    x = jax.random.normal(jax.random.PRNGKey(0), (S, B, d_model), dtype=jnp.float32)
    out = jax.block_until_ready(positional_encoding(x, pe))
    ref = x + pe[:S]
    assert out.shape == x.shape and out.dtype == x.dtype
    assert jnp.allclose(out, ref, atol=1e-6, rtol=1e-6), "mismatch (f32 pallas path)"

    # --- 2) Ragged S: exercises cdiv grid + padded last row block ----------------
    S2 = 203
    x2 = jax.random.normal(jax.random.PRNGKey(1), (S2, B, d_model), dtype=jnp.float32)
    out2 = jax.block_until_ready(positional_encoding(x2, pe))
    assert jnp.allclose(out2, x2 + pe[:S2], atol=1e-6, rtol=1e-6), "mismatch (ragged S)"

    # --- 3) bf16: dtype-aware sublane granularity + pre-cast pe ------------------
    xb = jax.random.normal(jax.random.PRNGKey(2), (S, B, d_model),
                           dtype=jnp.float32).astype(jnp.bfloat16)
    outb = jax.block_until_ready(positional_encoding(xb, pe))
    refb = xb + pe[:S].astype(jnp.bfloat16)
    assert outb.dtype == jnp.bfloat16
    assert jnp.allclose(outb.astype(jnp.float32), refb.astype(jnp.float32),
                        atol=1e-2), "mismatch (bf16 pallas path)"

    # --- 4) Tiny-shape fallback ---------------------------------------------------
    xs = jax.random.normal(jax.random.PRNGKey(3), (8, 2, d_model), dtype=jnp.float32)
    outs = jax.block_until_ready(positional_encoding(xs, pe))
    assert outs.dtype == xs.dtype
    assert jnp.allclose(outs, xs + pe[:8], atol=1e-6), "mismatch (fallback path)"

    print("KERNEL_OK")
</pallas_src>

<mosaic_0001>
module attributes {stable_mosaic.version = 11 : i64} {
  func.func @_pos_enc_kernel(%arg0: i32, %arg1: i32, %arg2: memref<128x256xf32, #tpu.memory_space<vmem>>, %arg3: memref<128x128xf32, #tpu.memory_space<vmem>>, %arg4: memref<128x256xf32, #tpu.memory_space<vmem>>) attributes {dimension_semantics = [#tpu.dimension_semantics<parallel>, #tpu.dimension_semantics<parallel>], iteration_bounds = array<i64: 4, 1>, scalar_prefetch = 0 : i64, scratch_operands = 0 : i64, tpu.core_type = #tpu.core_type<tc>, window_params = [{transform_indices = @transform_0, window_bounds = array<i64: 128, 256>}, {transform_indices = @transform_1, window_bounds = array<i64: 128, 128>}, {transform_indices = @transform_2, window_bounds = array<i64: 128, 256>}]} {
    %c0 = arith.constant 0 : index
    %c0_0 = arith.constant 0 : index
    %0 = vector.load %arg2[%c0, %c0_0] : memref<128x256xf32, #tpu.memory_space<vmem>>, vector<128x128xf32>
    %c0_1 = arith.constant 0 : index
    %c0_2 = arith.constant 0 : index
    %1 = vector.load %arg3[%c0_1, %c0_2] : memref<128x128xf32, #tpu.memory_space<vmem>>, vector<128x128xf32>
    %2 = arith.addf %0, %1 : vector<128x128xf32>
    %c0_3 = arith.constant 0 : index
    %c0_4 = arith.constant 0 : index
    %3 = vector.load %arg4[%c0_3, %c0_4] : memref<128x256xf32, #tpu.memory_space<vmem>>, vector<128x128xf32>
    tpu.vector_store %arg4[%c0_3, %c0_4], %2 {strides = array<i32>} : memref<128x256xf32, #tpu.memory_space<vmem>>, vector<128x128xf32>,
    %c0_5 = arith.constant 0 : index
    %c128 = arith.constant 128 : index
    %4 = vector.load %arg2[%c0_5, %c128] : memref<128x256xf32, #tpu.memory_space<vmem>>, vector<128x128xf32>
    %c0_6 = arith.constant 0 : index
    %c0_7 = arith.constant 0 : index
    %5 = vector.load %arg3[%c0_6, %c0_7] : memref<128x128xf32, #tpu.memory_space<vmem>>, vector<128x128xf32>
    %6 = arith.addf %4, %5 : vector<128x128xf32>
    %c0_8 = arith.constant 0 : index
    %c128_9 = arith.constant 128 : index
    %7 = vector.load %arg4[%c0_8, %c128_9] : memref<128x256xf32, #tpu.memory_space<vmem>>, vector<128x128xf32>
    tpu.vector_store %arg4[%c0_8, %c128_9], %6 {strides = array<i32>} : memref<128x256xf32, #tpu.memory_space<vmem>>, vector<128x128xf32>,
    return
  }
  func.func @transform_0(%arg0: i32, %arg1: i32) -> (i32, i32) {
    %c0_i32 = arith.constant 0 : i32
    return %arg0, %arg1 : i32, i32
  }
  func.func @transform_1(%arg0: i32, %arg1: i32) -> (i32, i32) {
    %c0_i32 = arith.constant 0 : i32
    %c0_i32_0 = arith.constant 0 : i32
    return %arg0, %c0_i32 : i32, i32
  }
  func.func @transform_2(%arg0: i32, %arg1: i32) -> (i32, i32) {
    %c0_i32 = arith.constant 0 : i32
    return %arg0, %arg1 : i32, i32
  }
}

</mosaic_0001>

<llo_original>
// kernel: tpu_custom_call.1
$region0: #{tpu_custom_call.1}
  #allocation0 [shape = 'u32[]', space=smem, size = 0x4, offset = 0x4, fixed_abs, tag = 'smem constant byte address 0x4 - core index']
  #allocation1 [shape = 'u32[144,128]{1,0:T(1,128)}', space=vmem, size = 0x12000, scoped, tag = 'internal scratch']
  %s0 = inlined_call_operand.hbm [shape: f32[512,256], index: 0, kind: input, shape index: {}]
  %s1 = inlined_call_operand.hbm [shape: f32[5000,128], index: 1, kind: input, shape index: {}]
  %s2 = inlined_call_operand.hbm [shape: f32[512,256], index: 2, kind: output, shape index: {}]
  %s3 = sld [smem:[#allocation0]]
  $region49: #{tpu_custom_call.1} parent=0
    _
  %s5 = ssub.s32 1, %s3
  %s6 = scalar_select 0, %s5, %s3
  $region1: #{tpu_custom_call.1} parent=0
    #allocation2 [shape = 'u8[262144]{0}', space=vmem, size = 0x40000, scoped, tag = 'input window, operand 0']
    #allocation3 [shape = 's32[2]{0}', space=sflag, size = 0x8, scoped, tag = 'scoped memory for tpu_custom_call.1']
    #allocation4 [shape = 's32[2]{0}', space=sflag, size = 0x8, scoped, tag = 'scoped memory for tpu_custom_call.1']
    #allocation5 [shape = 'u8[131072]{0}', space=vmem, size = 0x20000, scoped, tag = 'input window, operand 1']
    #allocation6 [shape = 's32[2]{0}', space=sflag, size = 0x8, scoped, tag = 'scoped memory for tpu_custom_call.1']
    #allocation7 [shape = 'u8[262144]{0}', space=vmem, size = 0x40000, scoped, tag = 'output window, operand 0']
    %7 = vsyncpa [#allocation3], 0
    %s8 = scalar_lea.sflag [#allocation3], 1
    %9 = vsyncpa %s8, 0
    %10 = vsyncpa [#allocation6], 0
    %s11 = scalar_lea.sflag [#allocation6], 1
    %12 = vsyncpa %s11, 0
    %13 = vsyncpa [#allocation4], 0
    %s14 = scalar_lea.sflag [#allocation4], 1
    %15 = vsyncpa %s14, 0
    loop: start=0, step=1, limit=6
    $region2: #{tpu_custom_call.1} parent=1 // loop_pre_header
      _
    $region3: #{tpu_custom_call.1} parent=1 // loop_header
      %s17 = sphi 0, %s21
      %p18 = scmp.ge.s32.totalorder %s17, 6
      %s24 = sphi 0, %s36
      %s25 = sphi 0, %s32
      %s26 = sphi 0, %s24
      %s27 = sphi 0, %s25
      %s28 = sphi 0, %s26
      %s29 = sphi 0, %s27
      %s41 = sphi 0, %s43
      %s44 = sphi 0, %s41
      %s45 = sphi 0, %s44
      %s61 = sphi 0, %s45
      %s67 = sphi 0, %s69
      %s70 = sphi 0, %s67
      %s71 = sphi 0, %s70
      %s87 = sphi 0, %s71
      %s95 = sphi 0, %s97
      %s98 = sphi 0, %s95
      %s99 = sphi 0, %s98
      %s115 = sphi 0, %s99
    $region4: #{tpu_custom_call.1} parent=1 // loop_header_branch
      %20 = sbr.rel (%p18) target = $region8
    $region5: #{tpu_custom_call.1} parent=1 // loop_body
      %s22 = ssub.s32 %s17, 1
      %s23 = ssub.s32 %s17, 2
      %s30 = sadd.s32 1, %s25
      %p31 = scmp.ge.s32.totalorder %s30, 1
      %s32 = scalar_select %p31, 0, %s30
      %s33 = sadd.s32 1, %s24
      %s34 = scalar_select %p31, %s33, %s24
      %p35 = scmp.ge.s32.totalorder %s34, 4
      %s36 = scalar_select %p35, 0, %s34
      %s37 = ssub.s32 %s24, %s36
      %s38 = ssub.s32 %s25, %s32
      %s39 = sor.u32 %s37, %s38
      %p40 = scmp.eq.s32.totalorder %s39, 0
      %s42 = sadd.s32 %s41, 1
      %s43 = scalar_select %p40, %s41, %s42
      %p46 = pneg %p40
      %p47 = scmp.eq.s32.totalorder %s17, 3
      %p48 = por %p46, %p47
      %p49 = scmp.ne.s32.totalorder %s41, %s44
      %p50 = scmp.eq.s32.totalorder %s17, 0
      %p51 = por %p49, %p50
      %p52 = scmp.ne.s32.totalorder %s41, %s44
      %p53 = scmp.eq.s32.totalorder %s22, 3
      %p54 = por %p52, %p53
      %p55 = scmp.ne.s32.totalorder %s44, %s45
      %p56 = scmp.eq.s32.totalorder %s22, 0
      %p57 = por %p55, %p56
      %p58 = scmp.ne.s32.totalorder %s44, %s45
      %p59 = scmp.eq.s32.totalorder %s23, 3
      %p60 = por %p58, %p59
      %p62 = scmp.ne.s32.totalorder %s45, %s61
      %p63 = scmp.eq.s32.totalorder %s23, 0
      %p64 = por %p62, %p63
      %s65 = ssub.s32 %s24, %s36
      %p66 = scmp.eq.s32.totalorder %s65, 0
      %s68 = sadd.s32 %s67, 1
      %s69 = scalar_select %p66, %s67, %s68
      %p72 = pneg %p66
      %p73 = scmp.eq.s32.totalorder %s17, 3
      %p74 = por %p72, %p73
      %p75 = scmp.ne.s32.totalorder %s67, %s70
      %p76 = scmp.eq.s32.totalorder %s17, 0
      %p77 = por %p75, %p76
      %p78 = scmp.ne.s32.totalorder %s67, %s70
      %p79 = scmp.eq.s32.totalorder %s22, 3
      %p80 = por %p78, %p79
      %p81 = scmp.ne.s32.totalorder %s70, %s71
      %p82 = scmp.eq.s32.totalorder %s22, 0
      %p83 = por %p81, %p82
      %p84 = scmp.ne.s32.totalorder %s70, %s71
      %p85 = scmp.eq.s32.totalorder %s23, 3
      %p86 = por %p84, %p85
      %p88 = scmp.ne.s32.totalorder %s71, %s87
      %p89 = scmp.eq.s32.totalorder %s23, 0
      %p90 = por %p88, %p89
      %s91 = ssub.s32 %s24, %s36
      %s92 = ssub.s32 %s25, %s32
      %s93 = sor.u32 %s91, %s92
      %p94 = scmp.eq.s32.totalorder %s93, 0
      %s96 = sadd.s32 %s95, 1
      %s97 = scalar_select %p94, %s95, %s96
      %p100 = pneg %p94
      %p101 = scmp.eq.s32.totalorder %s17, 3
      %p102 = por %p100, %p101
      %p103 = scmp.ne.s32.totalorder %s95, %s98
      %p104 = scmp.eq.s32.totalorder %s17, 0
      %p105 = por %p103, %p104
      %p106 = scmp.ne.s32.totalorder %s95, %s98
      %p107 = scmp.eq.s32.totalorder %s22, 3
      %p108 = por %p106, %p107
      %p109 = scmp.ne.s32.totalorder %s98, %s99
      %p110 = scmp.eq.s32.totalorder %s22, 0
      %p111 = por %p109, %p110
      %p112 = scmp.ne.s32.totalorder %s98, %s99
      %p113 = scmp.eq.s32.totalorder %s23, 3
      %p114 = por %p112, %p113
      %p116 = scmp.ne.s32.totalorder %s99, %s115
      %p117 = scmp.eq.s32.totalorder %s23, 0
      %p118 = por %p116, %p117
      %p119 = scmp.le.s32.totalorder 1, %s17
      %p120 = scmp.lt.s32.totalorder %s17, 5
      %p121 = pnand %p119, %p120
      %p122 = pneg %p121
      // Predicated region
      $region9: #{tpu_custom_call.1} parent=5 // pred_check
        _
      $region10: #{tpu_custom_call.1} parent=5 // pred_check_branch
        %124 = sbr.rel (%p121) target = $region12
      $region11: #{tpu_custom_call.1} parent=5 // pred_region
        %s125 = ssub.s32 %s17, 1
      $region12: #{tpu_custom_call.1} parent=5 // pred_fallthru
        _
      %p126 = scmp.lt.s32.totalorder %s17, 4
      // Predicated region
      $region13: #{tpu_custom_call.1} parent=5 // pred_check
        %p127 = pneg %p126
      $region14: #{tpu_custom_call.1} parent=5 // pred_check_branch
        %129 = sbr.rel (%p127) target = $region16
      $region15: #{tpu_custom_call.1} parent=5 // pred_region
        // Predicated region
        $region17: #{tpu_custom_call.1} parent=15 // pred_check
          %p130 = pneg %p51
        $region18: #{tpu_custom_call.1} parent=15 // pred_check_branch
          %132 = sbr.rel (%p130) target = $region20
        $region19: #{tpu_custom_call.1} parent=15 // pred_region
          %s133 = sand.u32 %s41, 1
          %s134 = scalar_lea.sflag [#allocation3], %s133
          %s135 = sand.u32 %s41, 1
          %s136 = smul.addr %s135, 256
          %s137 = scalar_lea.vmem [#allocation2], %s136
          %s138 = smul.u32 16, %s24
          %s139 = smul.u32 2, %s25
          %s141 = ssub.s32 4096, 4096
          %142 = vsyncadd %s134, %s141
          %s143 = smul.addr %s138, 2
          %s144 = sadd.s32 %s139, %s143
          %s145 = smul.addr %s144, 128
          %s146 = scalar_lea.hbm %s0, %s145
          %s147 = sshll.u32 %s137, 4
          %s148 = int_to_ptr.vmem [resolvable:$true] %s147
          %153 = dma.hbm_to_vmem [thread:$0]  %s146, 4096, %s148, %s134, 256, 256, 16
        $region20: #{tpu_custom_call.1} parent=15 // pred_fallthru
          _
        // Predicated region
        $region21: #{tpu_custom_call.1} parent=15 // pred_check
          %p154 = pneg %p77
        $region22: #{tpu_custom_call.1} parent=15 // pred_check_branch
          %156 = sbr.rel (%p154) target = $region24
        $region23: #{tpu_custom_call.1} parent=15 // pred_region
          %s157 = sand.u32 %s67, 1
          %s158 = scalar_lea.sflag [#allocation6], %s157
          %s159 = sand.u32 %s67, 1
          %s160 = smul.addr %s159, 128
          %s161 = scalar_lea.vmem [#allocation5], %s160
          %s162 = smul.u32 16, %s24
          %s163 = ssub.s32 625, %s162
          %p164 = scmp.lt.s32.totalorder %s163, 16
          %s165 = scalar_select %p164, %s163, 16
          %s166 = smul.u32 128, %s165
          %s168 = ssub.s32 2048, %s166
          %169 = vsyncadd %s158, %s168
          %p170 = scmp.ne.s32.totalorder 0, %s166
          %s171 = smul.addr %s162, 128
          %s172 = scalar_lea.hbm %s1, %s171
          %s173 = smul.u32 8, %s165
          %s174 = sshll.u32 %s161, 4
          %s175 = int_to_ptr.vmem [resolvable:$true] %s174
          %s176 = sshll.u32 %s173, 4
          %180 = dma.hbm_to_vmem [thread:$0]  (%p170), %s172, %s176, %s175, %s158, 128, 128, 8
        $region24: #{tpu_custom_call.1} parent=15 // pred_fallthru
          _
      $region16: #{tpu_custom_call.1} parent=5 // pred_fallthru
        _
      %p181 = scmp.le.s32.totalorder 1, %s17
      %p182 = scmp.lt.s32.totalorder %s17, 5
      %p183 = pnand %p181, %p182
      %p184 = pneg %p183
      // Predicated region
      $region25: #{tpu_custom_call.1} parent=5 // pred_check
        _
      $region26: #{tpu_custom_call.1} parent=5 // pred_check_branch
        %186 = sbr.rel (%p183) target = $region28
      $region27: #{tpu_custom_call.1} parent=5 // pred_region
        %s187 = ssub.s32 %s17, 1
        %s188 = sand.u32 %s44, 1
        %s189 = scalar_lea.sflag [#allocation3], %s188
        %s190 = sand.u32 %s44, 1
        %s191 = smul.addr %s190, 256
        %s192 = scalar_lea.vmem [#allocation2], %s191
        // Predicated region
        $region29: #{tpu_custom_call.1} parent=27 // pred_check
          %p193 = pneg %p57
        $region30: #{tpu_custom_call.1} parent=27 // pred_check_branch
          %195 = sbr.rel (%p193) target = $region32
        $region31: #{tpu_custom_call.1} parent=27 // pred_region
          %196 = dma.done %s189, 4096
        $region32: #{tpu_custom_call.1} parent=27 // pred_fallthru
          _
        %s197 = sand.u32 %s70, 1
        %s198 = scalar_lea.sflag [#allocation6], %s197
        %s199 = sand.u32 %s70, 1
        %s200 = smul.addr %s199, 128
        %s201 = scalar_lea.vmem [#allocation5], %s200
        // Predicated region
        $region33: #{tpu_custom_call.1} parent=27 // pred_check
          %p202 = pneg %p83
        $region34: #{tpu_custom_call.1} parent=27 // pred_check_branch
          %204 = sbr.rel (%p202) target = $region36
        $region35: #{tpu_custom_call.1} parent=27 // pred_region
          %205 = dma.done %s198, 2048
        $region36: #{tpu_custom_call.1} parent=27 // pred_fallthru
          _
        %s206 = sand.u32 %s44, 1
        %s207 = scalar_lea.sflag [#allocation3], %s206
        %s208 = sand.u32 %s44, 1
        %s209 = smul.addr %s208, 256
        %s210 = scalar_lea.vmem [#allocation2], %s209
        %p211 = pneg %p57
        %p212 = pneg %p54
        %s213 = sand.u32 %s70, 1
        %s214 = scalar_lea.sflag [#allocation6], %s213
        %s215 = sand.u32 %s70, 1
        %s216 = smul.addr %s215, 128
        %s217 = scalar_lea.vmem [#allocation5], %s216
        %p218 = pneg %p83
        %p219 = pneg %p80
        %p220 = pneg %p111
        %p221 = pneg %p108
        %s222 = sand.u32 %s98, 1
        %s223 = scalar_lea.sflag [#allocation4], %s222
        %s224 = sand.u32 %s98, 1
        %s225 = smul.addr %s224, 256
        %s226 = scalar_lea.vmem [#allocation7], %s225
        %s227 = smul.u32 16, %s26
        %s228 = smul.u32 2, %s27
        %s229 = smul.u32 16, %s26
        %s230 = ssub.s32 625, %s229
        %p231 = scmp.lt.s32.totalorder %s230, 16
        %s232 = scalar_select %p231, %s230, 16
        %s233 = smul.u32 128, %s232
        %s234 = smul.u32 16, %s26
        %s235 = smul.u32 2, %s27
        %v236 = vld [vmem:[%s192] sm:$0xff]
        %v237 = vld [vmem:[%s192 + $0x10] sm:$0xff]
        %v238 = vld [vmem:[%s192 + $0x20] sm:$0xff]
        %v239 = vld [vmem:[%s192 + $0x30] sm:$0xff]
        %v240 = vld [vmem:[%s192 + $0x40] sm:$0xff]
        %v241 = vld [vmem:[%s192 + $0x50] sm:$0xff]
        %v242 = vld [vmem:[%s192 + $0x60] sm:$0xff]
        %v243 = vld [vmem:[%s192 + $0x70] sm:$0xff]
        %v244 = vld [vmem:[%s192 + $0x80] sm:$0xff]
        %v245 = vld [vmem:[%s192 + $0x90] sm:$0xff]
        %v246 = vld [vmem:[%s192 + $0xa0] sm:$0xff]
        %v247 = vld [vmem:[%s192 + $0xb0] sm:$0xff]
        %v248 = vld [vmem:[%s192 + $0xc0] sm:$0xff]
        %v249 = vld [vmem:[%s192 + $0xd0] sm:$0xff]
        %v250 = vld [vmem:[%s192 + $0xe0] sm:$0xff]
        %v251 = vld [vmem:[%s192 + $0xf0] sm:$0xff]
        %v252 = vld [vmem:[%s201] sm:$0xff]
        %v253 = vld [vmem:[%s201 + $0x8] sm:$0xff]
        %v254 = vld [vmem:[%s201 + $0x10] sm:$0xff]
        %v255 = vld [vmem:[%s201 + $0x18] sm:$0xff]
        %v256 = vld [vmem:[%s201 + $0x20] sm:$0xff]
        %v257 = vld [vmem:[%s201 + $0x28] sm:$0xff]
        %v258 = vld [vmem:[%s201 + $0x30] sm:$0xff]
        %v259 = vld [vmem:[%s201 + $0x38] sm:$0xff]
        %v260 = vld [vmem:[%s201 + $0x40] sm:$0xff]
        %v261 = vld [vmem:[%s201 + $0x48] sm:$0xff]
        %v262 = vld [vmem:[%s201 + $0x50] sm:$0xff]
        %v263 = vld [vmem:[%s201 + $0x58] sm:$0xff]
        %v264 = vld [vmem:[%s201 + $0x60] sm:$0xff]
        %v265 = vld [vmem:[%s201 + $0x68] sm:$0xff]
        %v266 = vld [vmem:[%s201 + $0x70] sm:$0xff]
        %v267 = vld [vmem:[%s201 + $0x78] sm:$0xff]
        %v268 = vadd.f32 %v236, %v252
        %v269 = vadd.f32 %v237, %v253
        %v270 = vadd.f32 %v238, %v254
        %v271 = vadd.f32 %v239, %v255
        %v272 = vadd.f32 %v240, %v256
        %v273 = vadd.f32 %v241, %v257
        %v274 = vadd.f32 %v242, %v258
        %v275 = vadd.f32 %v243, %v259
        %v276 = vadd.f32 %v244, %v260
        %v277 = vadd.f32 %v245, %v261
        %v278 = vadd.f32 %v246, %v262
        %v279 = vadd.f32 %v247, %v263
        %v280 = vadd.f32 %v248, %v264
        %v281 = vadd.f32 %v249, %v265
        %v282 = vadd.f32 %v250, %v266
        %v283 = vadd.f32 %v251, %v267
        %284 = vst [vmem:[%s226] sm:$0xff] %v268
        %285 = vst [vmem:[%s226 + $0x10] sm:$0xff] %v269
        %286 = vst [vmem:[%s226 + $0x20] sm:$0xff] %v270
        %287 = vst [vmem:[%s226 + $0x30] sm:$0xff] %v271
        %288 = vst [vmem:[%s226 + $0x40] sm:$0xff] %v272
        %289 = vst [vmem:[%s226 + $0x50] sm:$0xff] %v273
        %290 = vst [vmem:[%s226 + $0x60] sm:$0xff] %v274
        %291 = vst [vmem:[%s226 + $0x70] sm:$0xff] %v275
        %292 = vst [vmem:[%s226 + $0x80] sm:$0xff] %v276
        %293 = vst [vmem:[%s226 + $0x90] sm:$0xff] %v277
        %294 = vst [vmem:[%s226 + $0xa0] sm:$0xff] %v278
        %295 = vst [vmem:[%s226 + $0xb0] sm:$0xff] %v279
        %296 = vst [vmem:[%s226 + $0xc0] sm:$0xff] %v280
        %297 = vst [vmem:[%s226 + $0xd0] sm:$0xff] %v281
        %298 = vst [vmem:[%s226 + $0xe0] sm:$0xff] %v282
        %299 = vst [vmem:[%s226 + $0xf0] sm:$0xff] %v283
        %v300 = vld [vmem:[%s192 + $0x8] sm:$0xff]
        %v301 = vld [vmem:[%s192 + $0x18] sm:$0xff]
        %v302 = vld [vmem:[%s192 + $0x28] sm:$0xff]
        %v303 = vld [vmem:[%s192 + $0x38] sm:$0xff]
        %v304 = vld [vmem:[%s192 + $0x48] sm:$0xff]
        %v305 = vld [vmem:[%s192 + $0x58] sm:$0xff]
        %v306 = vld [vmem:[%s192 + $0x68] sm:$0xff]
        %v307 = vld [vmem:[%s192 + $0x78] sm:$0xff]
        %v308 = vld [vmem:[%s192 + $0x88] sm:$0xff]
        %v309 = vld [vmem:[%s192 + $0x98] sm:$0xff]
        %v310 = vld [vmem:[%s192 + $0xa8] sm:$0xff]
        %v311 = vld [vmem:[%s192 + $0xb8] sm:$0xff]
        %v312 = vld [vmem:[%s192 + $0xc8] sm:$0xff]
        %v313 = vld [vmem:[%s192 + $0xd8] sm:$0xff]
        %v314 = vld [vmem:[%s192 + $0xe8] sm:$0xff]
        %v315 = vld [vmem:[%s192 + $0xf8] sm:$0xff]
        %v316 = vld [vmem:[%s201] sm:$0xff]
        %v317 = vld [vmem:[%s201 + $0x8] sm:$0xff]
        %v318 = vld [vmem:[%s201 + $0x10] sm:$0xff]
        %v319 = vld [vmem:[%s201 + $0x18] sm:$0xff]
        %v320 = vld [vmem:[%s201 + $0x20] sm:$0xff]
        %v321 = vld [vmem:[%s201 + $0x28] sm:$0xff]
        %v322 = vld [vmem:[%s201 + $0x30] sm:$0xff]
        %v323 = vld [vmem:[%s201 + $0x38] sm:$0xff]
        %v324 = vld [vmem:[%s201 + $0x40] sm:$0xff]
        %v325 = vld [vmem:[%s201 + $0x48] sm:$0xff]
        %v326 = vld [vmem:[%s201 + $0x50] sm:$0xff]
        %v327 = vld [vmem:[%s201 + $0x58] sm:$0xff]
        %v328 = vld [vmem:[%s201 + $0x60] sm:$0xff]
        %v329 = vld [vmem:[%s201 + $0x68] sm:$0xff]
        %v330 = vld [vmem:[%s201 + $0x70] sm:$0xff]
        %v331 = vld [vmem:[%s201 + $0x78] sm:$0xff]
        %v332 = vadd.f32 %v300, %v316
        %v333 = vadd.f32 %v301, %v317
        %v334 = vadd.f32 %v302, %v318
        %v335 = vadd.f32 %v303, %v319
        %v336 = vadd.f32 %v304, %v320
        %v337 = vadd.f32 %v305, %v321
        %v338 = vadd.f32 %v306, %v322
        %v339 = vadd.f32 %v307, %v323
        %v340 = vadd.f32 %v308, %v324
        %v341 = vadd.f32 %v309, %v325
        %v342 = vadd.f32 %v310, %v326
        %v343 = vadd.f32 %v311, %v327
        %v344 = vadd.f32 %v312, %v328
        %v345 = vadd.f32 %v313, %v329
        %v346 = vadd.f32 %v314, %v330
        %v347 = vadd.f32 %v315, %v331
        %348 = vst [vmem:[%s226 + $0x8] sm:$0xff] %v332
        %349 = vst [vmem:[%s226 + $0x18] sm:$0xff] %v333
        %350 = vst [vmem:[%s226 + $0x28] sm:$0xff] %v334
        %351 = vst [vmem:[%s226 + $0x38] sm:$0xff] %v335
        %352 = vst [vmem:[%s226 + $0x48] sm:$0xff] %v336
        %353 = vst [vmem:[%s226 + $0x58] sm:$0xff] %v337
        %354 = vst [vmem:[%s226 + $0x68] sm:$0xff] %v338
        %355 = vst [vmem:[%s226 + $0x78] sm:$0xff] %v339
        %356 = vst [vmem:[%s226 + $0x88] sm:$0xff] %v340
        %357 = vst [vmem:[%s226 + $0x98] sm:$0xff] %v341
        %358 = vst [vmem:[%s226 + $0xa8] sm:$0xff] %v342
        %359 = vst [vmem:[%s226 + $0xb8] sm:$0xff] %v343
        %360 = vst [vmem:[%s226 + $0xc8] sm:$0xff] %v344
        %361 = vst [vmem:[%s226 + $0xd8] sm:$0xff] %v345
        %362 = vst [vmem:[%s226 + $0xe8] sm:$0xff] %v346
        %363 = vst [vmem:[%s226 + $0xf8] sm:$0xff] %v347
        %s364 = sand.u32 %s98, 1
        %s365 = scalar_lea.sflag [#allocation4], %s364
        %s366 = sand.u32 %s98, 1
        %s367 = smul.addr %s366, 256
        %s368 = scalar_lea.vmem [#allocation7], %s367
        // Predicated region
        $region37: #{tpu_custom_call.1} parent=27 // pred_check
          %p369 = pneg %p108
        $region38: #{tpu_custom_call.1} parent=27 // pred_check_branch
          %371 = sbr.rel (%p369) target = $region40
        $region39: #{tpu_custom_call.1} parent=27 // pred_region
          %s372 = smul.u32 16, %s26
          %s373 = smul.u32 2, %s27
          %s375 = ssub.s32 4096, 4096
          %376 = vsyncadd %s365, %s375
          %s377 = smul.addr %s372, 2
          %s378 = sadd.s32 %s373, %s377
          %s379 = smul.addr %s378, 128
          %s380 = scalar_lea.hbm %s2, %s379
          %s381 = sshll.u32 %s368, 4
          %s382 = int_to_ptr.vmem [resolvable:$true] %s381
          %387 = dma.vmem_to_hbm [thread:$0]  %s382, 4096, %s380, %s365, 256, 256, 16
        $region40: #{tpu_custom_call.1} parent=27 // pred_fallthru
          _
      $region28: #{tpu_custom_call.1} parent=5 // pred_fallthru
        _
      %p388 = scmp.le.s32.totalorder 2, %s17
      // Predicated region
      $region41: #{tpu_custom_call.1} parent=5 // pred_check
        %p389 = pneg %p388
      $region42: #{tpu_custom_call.1} parent=5 // pred_check_branch
        %391 = sbr.rel (%p389) target = $region44
      $region43: #{tpu_custom_call.1} parent=5 // pred_region
        %s392 = ssub.s32 %s17, 2
        // Predicated region
        $region45: #{tpu_custom_call.1} parent=43 // pred_check
          %p393 = pneg %p114
        $region46: #{tpu_custom_call.1} parent=43 // pred_check_branch
          %395 = sbr.rel (%p393) target = $region48
        $region47: #{tpu_custom_call.1} parent=43 // pred_region
          %s396 = sand.u32 %s99, 1
          %s397 = scalar_lea.sflag [#allocation4], %s396
          %s398 = sand.u32 %s99, 1
          %s399 = smul.addr %s398, 256
          %s400 = scalar_lea.vmem [#allocation7], %s399
          %401 = dma.done %s397, 4096
        $region48: #{tpu_custom_call.1} parent=43 // pred_fallthru
          _
      $region44: #{tpu_custom_call.1} parent=5 // pred_fallthru
        _
    $region6: #{tpu_custom_call.1} parent=1 // loop_footer
      %s21 = sadd.s32 1, %s17
    $region7: #{tpu_custom_call.1} parent=1 // loop_footer_branch
      %16 = sbr.rel target = $region3
    $region8: #{tpu_custom_call.1} parent=1 // loop_exit
      _
    %402 = vsyncpa [#allocation3], 1
    %s403 = scalar_lea.sflag [#allocation3], 1
    %404 = vsyncpa %s403, 1
    %405 = vsyncpa [#allocation6], 1
    %s406 = scalar_lea.sflag [#allocation6], 1
    %407 = vsyncpa %s406, 1
    %408 = vsyncpa [#allocation4], 1
    %s409 = scalar_lea.sflag [#allocation4], 1
    %410 = vsyncpa %s409, 1

</llo_original>
